<compile_context>
chip_gen: v6e
topology: v6e:2x2x1
jax: 0.10.0
libtpu: 0.0.40
codegen_flags: <defaults>
</compile_context>

<pallas_src>
import jax
import jax.numpy as jnp
from jax import lax
from jax.experimental import pallas as pl
from jax.experimental.pallas import tpu as pltpu

LANES = 128
MAX_TILE_R = 2048      # 2048 rows x 128 lanes x 4 B = 1 MiB per f32 input block
NCORE_SPLIT = 2        # leading "parallel" axis: up to 2x on v7x (2 TCs / chip)


def _make_dice_kernel(tile_r, rows, steps_total, steps_per_split, needs_mask):
    groups = tile_r // 8  # tile_r is always a multiple of 8

    def kernel(x_ref, t_ref, inter_ref, sum_ref):
        i = pl.program_id(1)  # reduction step within this split ("arbitrary")

        @pl.when(i == 0)
        def _():
            inter_ref[...] = jnp.zeros_like(inter_ref)
            sum_ref[...] = jnp.zeros_like(sum_ref)

        # Cast after load: the kernel reads the caller's dtype straight from HBM.
        x = x_ref[...].astype(jnp.float32)
        t = t_ref[...].astype(jnp.float32)

        if needs_mask:
            # Zero out rows past the true end of the data (partial last block
            # and/or clamped out-of-range steps of the last split).
            c = pl.program_id(0)
            start = (c * steps_per_split + i) * tile_r
            remaining = rows - start
            row_ids = lax.broadcasted_iota(jnp.int32, (tile_r, LANES), 0)
            keep = row_ids < remaining
            x = jnp.where(keep, x, 0.0)
            t = jnp.where(keep, t, 0.0)

        # Vector accumulation: sublane-grouped VPU adds into (8,128) partials.
        # den only needs sum(x)+sum(t), so accumulate (x+t) in one buffer.
        inter_ref[0] += jnp.sum((x * t).reshape(groups, 8, LANES), axis=0)
        sum_ref[0] += jnp.sum((x + t).reshape(groups, 8, LANES), axis=0)

    return kernel


@jax.jit
def dice_loss(inputs, target):
    """Pallas implementation of DiceLoss.forward. Returns a scalar f32."""
    assert inputs.shape == target.shape
    x = inputs.reshape(-1)
    t = target.reshape(-1)
    total = x.shape[0]

    # The lane-dense 2-D view (rows, 128) needs total % (8*128) == 0 so that
    # rows is a multiple of the sublane tile.  Typical NCHW segmentation maps
    # satisfy this already (no copy); otherwise pad the small remainder with
    # zeros, which does not change any of the three sums.
    pad = (-total) % (8 * LANES)
    if pad:
        # TODO(synk): mask the sub-1024-element ragged tail in-kernel too, to
        # avoid this copy for misaligned element counts.
        x = jnp.pad(x, (0, pad))
        t = jnp.pad(t, (0, pad))
    rows = (total + pad) // LANES  # multiple of 8

    tile_r = min(MAX_TILE_R, rows)
    steps_total = pl.cdiv(rows, tile_r)
    nsplit = min(NCORE_SPLIT, steps_total)
    steps_per_split = pl.cdiv(steps_total, nsplit)
    needs_mask = (rows % tile_r != 0) or (steps_total % nsplit != 0)

    x2 = x.reshape(rows, LANES)
    t2 = t.reshape(rows, LANES)

    def in_map(c, i):
        # Clamp so the DMA never targets a block past the end of the array;
        # the in-kernel row mask zeroes any re-read data.
        step = jnp.minimum(c * steps_per_split + i, steps_total - 1)
        return (step, 0)

    def out_map(c, i):
        return (c, 0, 0)  # resident across the reduction axis -> accumulator

    kernel = _make_dice_kernel(tile_r, rows, steps_total, steps_per_split,
                               needs_mask)

    bytes_accessed = (x2.size * x2.dtype.itemsize
                      + t2.size * t2.dtype.itemsize
                      + 2 * nsplit * 8 * LANES * 4)

    inter_part, sum_part = pl.pallas_call(
        kernel,
        out_shape=(
            jax.ShapeDtypeStruct((nsplit, 8, LANES), jnp.float32),
            jax.ShapeDtypeStruct((nsplit, 8, LANES), jnp.float32),
        ),
        grid_spec=pltpu.PrefetchScalarGridSpec(
            num_scalar_prefetch=0,
            grid=(nsplit, steps_per_split),
            in_specs=[
                pl.BlockSpec((tile_r, LANES), in_map),
                pl.BlockSpec((tile_r, LANES), in_map),
            ],
            out_specs=[
                pl.BlockSpec((1, 8, LANES), out_map),
                pl.BlockSpec((1, 8, LANES), out_map),
            ],
        ),
        compiler_params=pltpu.CompilerParams(
            dimension_semantics=("parallel", "arbitrary"),
        ),
        cost_estimate=pl.CostEstimate(
            flops=int(3 * total),
            transcendentals=0,
            bytes_accessed=int(bytes_accessed),
        ),
    )(x2, t2)

    # Final tiny cross-lane reduce + scalar math on nsplit * 2 * (8,128) floats.
    smooth = 1.0
    inter = jnp.sum(inter_part)
    num = 2.0 * inter + smooth
    den = jnp.sum(sum_part) + smooth
    return (1.0 - num / den).astype(jnp.float32)


def dice_loss_ref(inputs, target):
    """Pure-JAX reference matching the PyTorch module exactly."""
    smooth = 1.0
    xf = inputs.astype(jnp.float32)
    tf = target.astype(jnp.float32)
    inter = jnp.sum(xf * tf)
    num = 2.0 * inter + smooth
    den = jnp.sum(xf) + jnp.sum(tf) + smooth
    return 1.0 - num / den


if __name__ == "__main__":
    key = jax.random.PRNGKey(0)
    k1, k2 = jax.random.split(key)
    # NCHW, matching the PyTorch convention for segmentation maps.
    x = jax.random.uniform(k1, (2, 4, 16, 16), dtype=jnp.float32)
    tgt = (jax.random.uniform(k2, (2, 4, 16, 16)) > 0.5).astype(jnp.float32)

    loss = dice_loss(x, tgt)
    loss = jax.block_until_ready(loss)

    ref = dice_loss_ref(x, tgt)
    assert jnp.allclose(loss, ref, rtol=1e-6, atol=1e-6), (loss, ref)
    print("KERNEL_OK")
</pallas_src>

<mosaic_0001>
module attributes {stable_mosaic.version = 11 : i64} {
  func.func @kernel(%arg0: i32, %arg1: i32, %arg2: memref<16x128xf32, #tpu.memory_space<vmem>>, %arg3: memref<16x128xf32, #tpu.memory_space<vmem>>, %arg4: memref<1x8x128xf32, #tpu.memory_space<vmem>>, %arg5: memref<1x8x128xf32, #tpu.memory_space<vmem>>) attributes {dimension_semantics = [#tpu.dimension_semantics<parallel>, #tpu.dimension_semantics<arbitrary>], iteration_bounds = array<i64: 1, 1>, scalar_prefetch = 0 : i64, scratch_operands = 0 : i64, tpu.core_type = #tpu.core_type<tc>, window_params = [{transform_indices = @transform_0, window_bounds = array<i64: 16, 128>}, {transform_indices = @transform_1, window_bounds = array<i64: 16, 128>}, {transform_indices = @transform_2, window_bounds = array<i64: 1, 8, 128>}, {transform_indices = @transform_3, window_bounds = array<i64: 1, 8, 128>}]} {
    %c0_i32 = arith.constant 0 : i32
    %0 = arith.cmpi eq, %arg1, %c0_i32 : i32
    %1 = arith.extui %0 : i1 to i32
    %c0_i32_0 = arith.constant 0 : i32
    %2 = arith.cmpi ne, %1, %c0_i32_0 : i32
    scf.if %2 {
      %cst_17 = arith.constant 0.000000e+00 : f32
      %23 = vector.broadcast %cst_17 : f32 to vector<1x8x128xf32>
      %c0_18 = arith.constant 0 : index
      %c0_19 = arith.constant 0 : index
      %c0_20 = arith.constant 0 : index
      %24 = vector.load %arg4[%c0_18, %c0_19, %c0_20] : memref<1x8x128xf32, #tpu.memory_space<vmem>>, vector<1x8x128xf32>
      tpu.vector_store %arg4[%c0_18, %c0_19, %c0_20], %23 {strides = array<i32>} : memref<1x8x128xf32, #tpu.memory_space<vmem>>, vector<1x8x128xf32>,
      %cst_21 = arith.constant 0.000000e+00 : f32
      %25 = vector.broadcast %cst_21 : f32 to vector<1x8x128xf32>
      %c0_22 = arith.constant 0 : index
      %c0_23 = arith.constant 0 : index
      %c0_24 = arith.constant 0 : index
      %26 = vector.load %arg5[%c0_22, %c0_23, %c0_24] : memref<1x8x128xf32, #tpu.memory_space<vmem>>, vector<1x8x128xf32>
      tpu.vector_store %arg5[%c0_22, %c0_23, %c0_24], %25 {strides = array<i32>} : memref<1x8x128xf32, #tpu.memory_space<vmem>>, vector<1x8x128xf32>,
    } else {
    }
    %c0 = arith.constant 0 : index
    %c0_1 = arith.constant 0 : index
    %3 = vector.load %arg2[%c0, %c0_1] : memref<16x128xf32, #tpu.memory_space<vmem>>, vector<16x128xf32>
    %c0_2 = arith.constant 0 : index
    %c0_3 = arith.constant 0 : index
    %4 = vector.load %arg3[%c0_2, %c0_3] : memref<16x128xf32, #tpu.memory_space<vmem>>, vector<16x128xf32>
    %c0_4 = arith.constant 0 : index
    %c0_5 = arith.constant 0 : index
    %c0_6 = arith.constant 0 : index
    %5 = vector.load %arg4[%c0_4, %c0_5, %c0_6] : memref<1x8x128xf32, #tpu.memory_space<vmem>>, vector<1x8x128xf32>
    %6 = vector.shape_cast %5 : vector<1x8x128xf32> to vector<8x128xf32>
    %7 = arith.mulf %3, %4 : vector<16x128xf32>
    %8 = vector.shape_cast %7 : vector<16x128xf32> to vector<2x8x128xf32>
    %cst = arith.constant dense<0.000000e+00> : vector<8x128xf32>
    %9 = vector.multi_reduction <add>, %8, %cst [0] : vector<2x8x128xf32> to vector<8x128xf32>
    %10 = arith.addf %6, %9 : vector<8x128xf32>
    %c0_7 = arith.constant 0 : index
    %c0_8 = arith.constant 0 : index
    %c0_9 = arith.constant 0 : index
    %11 = vector.load %arg4[%c0_7, %c0_8, %c0_9] : memref<1x8x128xf32, #tpu.memory_space<vmem>>, vector<1x8x128xf32>
    %12 = vector.shape_cast %11 : vector<1x8x128xf32> to vector<8x128xf32>
    %13 = vector.shape_cast %10 : vector<8x128xf32> to vector<1x8x128xf32>
    tpu.vector_store %arg4[%c0_7, %c0_8, %c0_9], %13 {strides = array<i32>} : memref<1x8x128xf32, #tpu.memory_space<vmem>>, vector<1x8x128xf32>,
    %c0_10 = arith.constant 0 : index
    %c0_11 = arith.constant 0 : index
    %c0_12 = arith.constant 0 : index
    %14 = vector.load %arg5[%c0_10, %c0_11, %c0_12] : memref<1x8x128xf32, #tpu.memory_space<vmem>>, vector<1x8x128xf32>
    %15 = vector.shape_cast %14 : vector<1x8x128xf32> to vector<8x128xf32>
    %16 = arith.addf %3, %4 : vector<16x128xf32>
    %17 = vector.shape_cast %16 : vector<16x128xf32> to vector<2x8x128xf32>
    %cst_13 = arith.constant dense<0.000000e+00> : vector<8x128xf32>
    %18 = vector.multi_reduction <add>, %17, %cst_13 [0] : vector<2x8x128xf32> to vector<8x128xf32>
    %19 = arith.addf %15, %18 : vector<8x128xf32>
    %c0_14 = arith.constant 0 : index
    %c0_15 = arith.constant 0 : index
    %c0_16 = arith.constant 0 : index
    %20 = vector.load %arg5[%c0_14, %c0_15, %c0_16] : memref<1x8x128xf32, #tpu.memory_space<vmem>>, vector<1x8x128xf32>
    %21 = vector.shape_cast %20 : vector<1x8x128xf32> to vector<8x128xf32>
    %22 = vector.shape_cast %19 : vector<8x128xf32> to vector<1x8x128xf32>
    tpu.vector_store %arg5[%c0_14, %c0_15, %c0_16], %22 {strides = array<i32>} : memref<1x8x128xf32, #tpu.memory_space<vmem>>, vector<1x8x128xf32>,
    return
  }
  func.func @transform_0(%arg0: i32, %arg1: i32) -> (i32, i32) {
    %c1_i32 = arith.constant 1 : i32
    %0 = arith.muli %arg0, %c1_i32 : i32
    %1 = arith.addi %0, %arg1 : i32
    %c0_i32 = arith.constant 0 : i32
    %2 = arith.minsi %1, %c0_i32 : i32
    %c0_i32_0 = arith.constant 0 : i32
    %c0_i32_1 = arith.constant 0 : i32
    return %2, %c0_i32_0 : i32, i32
  }
  func.func @transform_1(%arg0: i32, %arg1: i32) -> (i32, i32) {
    %c1_i32 = arith.constant 1 : i32
    %0 = arith.muli %arg0, %c1_i32 : i32
    %1 = arith.addi %0, %arg1 : i32
    %c0_i32 = arith.constant 0 : i32
    %2 = arith.minsi %1, %c0_i32 : i32
    %c0_i32_0 = arith.constant 0 : i32
    %c0_i32_1 = arith.constant 0 : i32
    return %2, %c0_i32_0 : i32, i32
  }
  func.func @transform_2(%arg0: i32, %arg1: i32) -> (i32, i32, i32) {
    %c0_i32 = arith.constant 0 : i32
    %c0_i32_0 = arith.constant 0 : i32
    %c0_i32_1 = arith.constant 0 : i32
    return %arg0, %c0_i32, %c0_i32_0 : i32, i32, i32
  }
  func.func @transform_3(%arg0: i32, %arg1: i32) -> (i32, i32, i32) {
    %c0_i32 = arith.constant 0 : i32
    %c0_i32_0 = arith.constant 0 : i32
    %c0_i32_1 = arith.constant 0 : i32
    return %arg0, %c0_i32, %c0_i32_0 : i32, i32, i32
  }
}

</mosaic_0001>

<llo_original>
// kernel: dice_loss.1
$region0: #{dice_loss.1}
  #allocation0 [shape = 'u32[]', space=smem, size = 0x4, offset = 0x4, fixed_abs, tag = 'smem constant byte address 0x4 - core index']
  #allocation1 [shape = 'u32[144,128]{1,0:T(1,128)}', space=vmem, size = 0x12000, scoped, tag = 'internal scratch']
  %s0 = inlined_call_operand.vmem [shape: f32[16,128], index: 0, kind: input, shape index: {}]
  %s1 = inlined_call_operand.vmem [shape: f32[16,128], index: 1, kind: input, shape index: {}]
  %s2 = inlined_call_operand.vmem [shape: f32[1,8,128], index: 2, kind: output, shape index: {0}]
  %s3 = inlined_call_operand.vmem [shape: f32[1,8,128], index: 3, kind: output, shape index: {1}]
  %4 = xla_tuple %s2, %s3
  %s5 = sld [smem:[#allocation0]]
  $region30: #{dice_loss.1} parent=0
    _
  %s7 = ssub.s32 1, %s5
  %s8 = scalar_select 0, %s7, %s5
  // Predicated region
  $region2: #{dice_loss.1} parent=0 // pred_check
    _
  $region3: #{dice_loss.1} parent=0 // pred_check_branch
    %10 = sbr.rel (0) target = $region5
  $region4: #{dice_loss.1} parent=0 // pred_region
    %s11 = sadd.s32 0, 0
    %p12 = scmp.lt.s32.totalorder %s11, 0
    %s13 = scalar_select %p12, %s11, 0
    %s14 = smul.u32 2, %s13
    %p15 = scmp.lt.s32.totalorder %s14, 1
    %s16 = scalar_select %p15, %s14, 1
    %s17 = smul.addr %s16, 8
    %s18 = scalar_lea.vmem %s0, %s17
    %s19 = sadd.s32 0, 0
    %p20 = scmp.lt.s32.totalorder %s19, 0
    %s21 = scalar_select %p20, %s19, 0
    %s22 = smul.u32 2, %s21
  $region5: #{dice_loss.1} parent=0 // pred_fallthru
    _
  // Predicated region
  $region6: #{dice_loss.1} parent=0 // pred_check
    _
  $region7: #{dice_loss.1} parent=0 // pred_check_branch
    %24 = sbr.rel (0) target = $region9
  $region8: #{dice_loss.1} parent=0 // pred_region
    %s25 = sadd.s32 0, 0
    %p26 = scmp.lt.s32.totalorder %s25, 0
    %s27 = scalar_select %p26, %s25, 0
    %s28 = smul.u32 2, %s27
    %p29 = scmp.lt.s32.totalorder %s28, 1
    %s30 = scalar_select %p29, %s28, 1
    %s31 = smul.addr %s30, 8
    %s32 = scalar_lea.vmem %s1, %s31
    %s33 = sadd.s32 0, 0
    %p34 = scmp.lt.s32.totalorder %s33, 0
    %s35 = scalar_select %p34, %s33, 0
    %s36 = smul.u32 2, %s35
  $region9: #{dice_loss.1} parent=0 // pred_fallthru
    _
  %s37 = sadd.s32 0, 0
  %p38 = scmp.lt.s32.totalorder %s37, 0
  %s39 = scalar_select %p38, %s37, 0
  %s40 = smul.u32 2, %s39
  %p41 = scmp.lt.s32.totalorder %s40, 1
  %s42 = scalar_select %p41, %s40, 1
  %s43 = smul.addr %s42, 8
  %s44 = scalar_lea.vmem %s0, %s43
  %s45 = sadd.s32 0, 0
  %p46 = scmp.lt.s32.totalorder %s45, 0
  %s47 = scalar_select %p46, %s45, 0
  %s48 = smul.u32 2, %s47
  %p49 = scmp.lt.s32.totalorder %s48, 1
  %s50 = scalar_select %p49, %s48, 1
  %s51 = smul.addr %s50, 8
  %s52 = scalar_lea.vmem %s1, %s51
  %s53 = sadd.s32 0, 0
  %p54 = scmp.lt.s32.totalorder %s53, 0
  %s55 = scalar_select %p54, %s53, 0
  %s56 = smul.u32 2, %s55
  %p57 = scmp.lt.s32.totalorder %s56, 1
  %s58 = scalar_select %p57, %s56, 1
  %s59 = smul.addr %s58, 8
  %s60 = scalar_lea.vmem %s0, %s59
  %s61 = sadd.s32 0, 0
  %p62 = scmp.lt.s32.totalorder %s61, 0
  %s63 = scalar_select %p62, %s61, 0
  %s64 = smul.u32 2, %s63
  %s65 = sadd.s32 0, 0
  %p66 = scmp.lt.s32.totalorder %s65, 0
  %s67 = scalar_select %p66, %s65, 0
  %s68 = smul.u32 2, %s67
  %p69 = scmp.lt.s32.totalorder %s68, 1
  %s70 = scalar_select %p69, %s68, 1
  %s71 = smul.addr %s70, 8
  %s72 = scalar_lea.vmem %s1, %s71
  %s73 = sadd.s32 0, 0
  %p74 = scmp.lt.s32.totalorder %s73, 0
  %s75 = scalar_select %p74, %s73, 0
  %s76 = smul.u32 2, %s75
  %p77 = scmp.eq.s32.totalorder 0, 0
  // Predicated region
  $region10: #{dice_loss.1} parent=0 // pred_check
    %p78 = pneg %p77
  $region11: #{dice_loss.1} parent=0 // pred_check_branch
    %80 = sbr.rel (%p78) target = $region13
  $region12: #{dice_loss.1} parent=0 // pred_region
    %81 = vst [vmem:[%s2] sm:$0xff] 0.0
    %82 = vst [vmem:[%s3] sm:$0xff] 0.0
  $region13: #{dice_loss.1} parent=0 // pred_fallthru
    _
  %v83 = vld [vmem:[%s60] sm:$0xff]
  %v84 = vld [vmem:[%s60 + $0x8] sm:$0xff]
  %v85 = vld [vmem:[%s72] sm:$0xff]
  %v86 = vld [vmem:[%s72 + $0x8] sm:$0xff]
  %v87 = vld [vmem:[%s2] sm:$0xff]
  %v88 = vmul.f32 %v83, %v85
  %v89 = vmul.f32 %v84, %v86
  %v90 = vadd.f32 %v88, %v89
  %v91 = vadd.f32 %v87, %v90
  %92 = vst [vmem:[%s2] sm:$0xff] %v91
  %v93 = vld [vmem:[%s3] sm:$0xff]
  %v94 = vadd.f32 %v83, %v85
  %v95 = vadd.f32 %v84, %v86
  %v96 = vadd.f32 %v94, %v95
  %v97 = vadd.f32 %v93, %v96
  %98 = vst [vmem:[%s3] sm:$0xff] %v97
  // Predicated region
  $region14: #{dice_loss.1} parent=0 // pred_check
    _
  $region15: #{dice_loss.1} parent=0 // pred_check_branch
    %100 = sbr.rel (0) target = $region17
  $region16: #{dice_loss.1} parent=0 // pred_region
    _
  $region17: #{dice_loss.1} parent=0 // pred_fallthru
    _
  // Predicated region
  $region18: #{dice_loss.1} parent=0 // pred_check
    _
  $region19: #{dice_loss.1} parent=0 // pred_check_branch
    %102 = sbr.rel (0) target = $region21
  $region20: #{dice_loss.1} parent=0 // pred_region
    _
  $region21: #{dice_loss.1} parent=0 // pred_fallthru
    _
  // Predicated region
  $region22: #{dice_loss.1} parent=0 // pred_check
    _
  $region23: #{dice_loss.1} parent=0 // pred_check_branch
    %104 = sbr.rel (0) target = $region25
  $region24: #{dice_loss.1} parent=0 // pred_region
    _
  $region25: #{dice_loss.1} parent=0 // pred_fallthru
    _
  // Predicated region
  $region26: #{dice_loss.1} parent=0 // pred_check
    _
  $region27: #{dice_loss.1} parent=0 // pred_check_branch
    %106 = sbr.rel (0) target = $region29
  $region28: #{dice_loss.1} parent=0 // pred_region
    _
  $region29: #{dice_loss.1} parent=0 // pred_fallthru
    _

</llo_original>
